<compile_context>
chip_gen: v7x
topology: tpu7x:2x2x1
jax: 0.10.0
libtpu: 0.0.40
codegen_flags: <defaults>
</compile_context>

<pallas_src>
import functools

import jax
import jax.numpy as jnp
from jax import lax
from jax.experimental import pallas as pl
from jax.experimental.pallas import tpu as pltpu


def _mkconv_kernel(x_ref, w_ref, s_ref, b_ref, o_ref, pad_ref, slab_ref, *,
                   H, W, Kmax, lane_pad):
    """Fused multi-kernel Conv2d + folded BN + ReLU for one batch element.

    x_ref   : (1, Cin, H*W)               flattened NCHW input image
    w_ref   : (Cout_total, Kmax*Kmax*Cin) im2col weights, all branches embedded
    s_ref   : (Cout_total, 1)             folded BN scale
    b_ref   : (Cout_total, 1)             folded BN bias (includes conv bias)
    o_ref   : (1, Cout_total, H*W)        flattened NCHW output
    pad_ref : (Cin, P + H*W + P)          VMEM scratch: zero-haloed flat image
    slab_ref: (Kmax*Kmax*Cin, H*W)        VMEM scratch: im2col patch slab
    """
    HW = H * W
    P = lane_pad
    cin = x_ref.shape[1]
    pmax = Kmax // 2

    # Zero the halos and drop the image into the center of the padded buffer
    # (all three stores are lane-aligned and disjoint).
    zhalo = jnp.zeros((cin, P), dtype=pad_ref.dtype)
    pad_ref[:, :P] = zhalo
    pad_ref[:, P + HW:P + HW + P] = zhalo
    pad_ref[:, P:P + HW] = x_ref[0]

    # Column index of every flattened output position; precompute (hoisted)
    # per-dw masks that kill contributions wrapping across image rows.
    col = lax.broadcasted_iota(jnp.int32, (cin, HW), 1) % W
    col_mask = {}
    for dw in range(-pmax, pmax + 1):
        if dw < 0:
            col_mask[dw] = col >= -dw
        elif dw > 0:
            col_mask[dw] = col < W - dw

    # im2col: one shifted (Cin, H*W) view of the zero-haloed image per tap.
    # Row/halo out-of-bounds reads land in the zero halo; column wrap-around
    # is removed by the per-dw mask.
    for kh in range(Kmax):
        for kw in range(Kmax):
            dh, dw = kh - pmax, kw - pmax
            off = dh * W + dw
            xs = pad_ref[:, P + off:P + off + HW]
            if dw != 0:
                xs = jnp.where(col_mask[dw], xs, 0.0).astype(slab_ref.dtype)
            t = kh * Kmax + kw
            slab_ref[t * cin:(t + 1) * cin, :] = xs

    # One MXU matmul for every branch and tap:
    #   (Cout_total, Kmax*Kmax*Cin) @ (Kmax*Kmax*Cin, H*W) -> (Cout_total, H*W)
    acc = jnp.dot(w_ref[...], slab_ref[...], preferred_element_type=jnp.float32)
    y = acc * s_ref[...] + b_ref[...]          # folded BN, f32 epilogue
    o_ref[0] = jnp.maximum(y, 0.0).astype(o_ref.dtype)


def multi_kernel_conv2d(x_nchw, params, eps=1e-5, compute_dtype=jnp.float32):
    """Forward pass matching the PyTorch module in eval mode (NCHW in/out).

    compute_dtype: pass jnp.bfloat16 on v6e/v7x for ~2x MXU rate and half the
    activation/weight DMA bytes (accumulation + BN epilogue stay f32).
    Default f32 to hold 1e-4 tolerance vs the reference.
    """
    N, Cin, H, W = x_nchw.shape
    HW = H * W
    ksizes = [p["k"] for p in params]
    assert all(k % 2 == 1 for k in ksizes), "kernel_sizes must be odd"
    Kmax = max(ksizes)
    pmax = Kmax // 2
    Cout = params[0]["w"].shape[0]
    n_branch = len(params)
    Cout_total = n_branch * Cout
    KKC = Kmax * Kmax * Cin

    # Fold eval-mode BN into per-channel scale/bias and zero-embed every
    # branch's weights into one shared im2col weight matrix (tiny, weight-side).
    w_parts, s_parts, b_parts = [], [], []
    for p in params:
        k = p["k"]
        d = (Kmax - k) // 2
        wt = jnp.transpose(p["w"], (0, 2, 3, 1))             # (Cout, k, k, Cin)
        wt = jnp.pad(wt, ((0, 0), (d, d), (d, d), (0, 0)))   # (Cout, Kmax, Kmax, Cin)
        w_parts.append(wt.reshape(Cout, KKC))
        s = p["gamma"] / jnp.sqrt(p["rv"] + eps)
        b = (p["cb"] - p["rm"]) * s + p["beta"]
        s_parts.append(s)
        b_parts.append(b)
    w_all = jnp.concatenate(w_parts, axis=0).astype(compute_dtype)   # (Cout_total, KKC)
    s_all = jnp.concatenate(s_parts)[:, None].astype(jnp.float32)    # (Cout_total, 1)
    b_all = jnp.concatenate(b_parts)[:, None].astype(jnp.float32)

    x_flat = x_nchw.reshape(N, Cin, HW).astype(compute_dtype)        # free reshape

    halo = pmax * W + pmax                    # max |flat shift| of any tap
    P = (halo // 128 + 1) * 128               # lane-aligned halo width

    kern = functools.partial(_mkconv_kernel, H=H, W=W, Kmax=Kmax, lane_pad=P)

    out = pl.pallas_call(
        kern,
        out_shape=jax.ShapeDtypeStruct((N, Cout_total, HW), jnp.float32),
        grid_spec=pltpu.PrefetchScalarGridSpec(
            num_scalar_prefetch=0,
            grid=(N,),
            in_specs=[
                pl.BlockSpec((1, Cin, HW), lambda n: (n, 0, 0)),
                pl.BlockSpec((Cout_total, KKC), lambda n: (0, 0)),
                pl.BlockSpec((Cout_total, 1), lambda n: (0, 0)),
                pl.BlockSpec((Cout_total, 1), lambda n: (0, 0)),
            ],
            out_specs=pl.BlockSpec((1, Cout_total, HW), lambda n: (n, 0, 0)),
            scratch_shapes=[
                pltpu.VMEM((Cin, P + HW + P), compute_dtype),
                pltpu.VMEM((KKC, HW), compute_dtype),
            ],
        ),
        compiler_params=pltpu.CompilerParams(
            dimension_semantics=("parallel",)),
    )(x_flat, w_all, s_all, b_all)

    return out.reshape(N, Cout_total, H, W)


def init_params(key, in_channels, out_channels, kernel_sizes):
    """Deterministic synthetic parameters mirroring the PyTorch module shapes."""
    params = []
    for i, k in enumerate(kernel_sizes):
        kk = jax.random.fold_in(key, i)
        k1, k2, k3, k4, k5, k6 = jax.random.split(kk, 6)
        fan_in = in_channels * k * k
        bound = 1.0 / (fan_in ** 0.5)
        params.append(dict(
            k=k,
            w=jax.random.uniform(k1, (out_channels, in_channels, k, k),
                                 jnp.float32, -bound, bound),   # OIHW like torch
            cb=jax.random.uniform(k2, (out_channels,), jnp.float32, -bound, bound),
            gamma=jax.random.uniform(k3, (out_channels,), jnp.float32, 0.5, 1.5),
            beta=jax.random.uniform(k4, (out_channels,), jnp.float32, -0.5, 0.5),
            rm=jax.random.uniform(k5, (out_channels,), jnp.float32, -0.5, 0.5),
            rv=jax.random.uniform(k6, (out_channels,), jnp.float32, 0.5, 1.5),
        ))
    return params


def reference(x_nchw, params, eps=1e-5):
    """Pure-JAX reference (lax conv) matching the PyTorch forward in eval mode."""
    outs = []
    for p in params:
        k = p["k"]
        y = lax.conv_general_dilated(
            x_nchw, p["w"], window_strides=(1, 1),
            padding=[(k // 2, k // 2), (k // 2, k // 2)],
            dimension_numbers=("NCHW", "OIHW", "NCHW"))
        y = y + p["cb"][None, :, None, None]
        s = (p["gamma"] / jnp.sqrt(p["rv"] + eps))[None, :, None, None]
        y = (y - p["rm"][None, :, None, None]) * s + p["beta"][None, :, None, None]
        outs.append(jnp.maximum(y, 0.0))
    return jnp.concatenate(outs, axis=1)


if __name__ == "__main__":
    key = jax.random.PRNGKey(0)
    in_channels, out_channels = 4, 8
    kernel_sizes = [1, 3, 5]
    N, H, W = 2, 16, 16

    kx, kp = jax.random.split(key)
    x = jax.random.normal(kx, (N, in_channels, H, W), jnp.float32)
    params = init_params(kp, in_channels, out_channels, kernel_sizes)

    out = jax.block_until_ready(multi_kernel_conv2d(x, params))
    ref = jax.block_until_ready(reference(x, params))

    assert out.shape == (N, out_channels * len(kernel_sizes), H, W), out.shape
    assert jnp.allclose(out, ref, atol=1e-4, rtol=1e-4), \
        float(jnp.max(jnp.abs(out - ref)))

    print("KERNEL_OK")
</pallas_src>

<mosaic_0001>
module attributes {stable_mosaic.version = 11 : i64} {
  func.func @_mkconv_kernel(%arg0: i32, %arg1: memref<1x4x256xf32, #tpu.memory_space<vmem>>, %arg2: memref<24x100xf32, #tpu.memory_space<vmem>>, %arg3: memref<24x1xf32, #tpu.memory_space<vmem>>, %arg4: memref<24x1xf32, #tpu.memory_space<vmem>>, %arg5: memref<1x24x256xf32, #tpu.memory_space<vmem>>, %arg6: memref<4x512xf32, #tpu.memory_space<vmem>>, %arg7: memref<100x256xf32, #tpu.memory_space<vmem>>) attributes {dimension_semantics = [#tpu.dimension_semantics<parallel>], iteration_bounds = array<i64: 2>, scalar_prefetch = 0 : i64, scratch_operands = 2 : i64, tpu.core_type = #tpu.core_type<tc>, window_params = [{transform_indices = @transform_0, window_bounds = array<i64: 1, 4, 256>}, {pipeline_mode = #tpu.pipeline_mode<synchronous>, transform_indices = @transform_1, window_bounds = array<i64: 24, 100>}, {pipeline_mode = #tpu.pipeline_mode<synchronous>, transform_indices = @transform_2, window_bounds = array<i64: 24, 1>}, {pipeline_mode = #tpu.pipeline_mode<synchronous>, transform_indices = @transform_3, window_bounds = array<i64: 24, 1>}, {transform_indices = @transform_4, window_bounds = array<i64: 1, 24, 256>}]} {
    %cst = arith.constant 0.000000e+00 : f32
    %0 = vector.broadcast %cst : f32 to vector<4x128xf32>
    %c0 = arith.constant 0 : index
    %c0_0 = arith.constant 0 : index
    %1 = vector.load %arg6[%c0, %c0_0] : memref<4x512xf32, #tpu.memory_space<vmem>>, vector<4x128xf32>
    tpu.vector_store %arg6[%c0, %c0_0], %0 {strides = array<i32>} : memref<4x512xf32, #tpu.memory_space<vmem>>, vector<4x128xf32>,
    %c0_1 = arith.constant 0 : index
    %c384 = arith.constant 384 : index
    %2 = vector.load %arg6[%c0_1, %c384] : memref<4x512xf32, #tpu.memory_space<vmem>>, vector<4x128xf32>
    tpu.vector_store %arg6[%c0_1, %c384], %0 {strides = array<i32>} : memref<4x512xf32, #tpu.memory_space<vmem>>, vector<4x128xf32>,
    %c0_2 = arith.constant 0 : index
    %c0_3 = arith.constant 0 : index
    %c0_4 = arith.constant 0 : index
    %3 = vector.load %arg1[%c0_2, %c0_3, %c0_4] : memref<1x4x256xf32, #tpu.memory_space<vmem>>, vector<1x4x256xf32>
    %4 = vector.shape_cast %3 : vector<1x4x256xf32> to vector<4x256xf32>
    %c0_5 = arith.constant 0 : index
    %c128 = arith.constant 128 : index
    %5 = vector.load %arg6[%c0_5, %c128] : memref<4x512xf32, #tpu.memory_space<vmem>>, vector<4x256xf32>
    tpu.vector_store %arg6[%c0_5, %c128], %4 {strides = array<i32>} : memref<4x512xf32, #tpu.memory_space<vmem>>, vector<4x256xf32>,
    %6 = tpu.iota {dimensions = array<i32: 1>} : vector<4x256xi32>
    %c16_i32 = arith.constant 16 : i32
    %c0_i32 = arith.constant 0 : i32
    %7 = arith.cmpi eq, %c16_i32, %c0_i32 : i32
    %c1_i32 = arith.constant 1 : i32
    %8 = arith.select %7, %c1_i32, %c16_i32 : i32
    %9 = vector.broadcast %8 : i32 to vector<4x256xi32>
    %10 = arith.remsi %6, %9 : vector<4x256xi32>
    %c0_i32_6 = arith.constant 0 : i32
    %11 = vector.broadcast %c0_i32_6 : i32 to vector<4x256xi32>
    %12 = arith.cmpi ne, %10, %11 : vector<4x256xi32>
    %c0_i32_7 = arith.constant 0 : i32
    %13 = vector.broadcast %c0_i32_7 : i32 to vector<4x256xi32>
    %14 = arith.cmpi slt, %10, %13 : vector<4x256xi32>
    %c0_i32_8 = arith.constant 0 : i32
    %15 = arith.cmpi slt, %8, %c0_i32_8 : i32
    %16 = vector.broadcast %15 : i1 to vector<4x256xi1>
    %17 = vector.broadcast %16 : vector<4x256xi1> to vector<4x256xi1>
    %18 = arith.xori %14, %17 : vector<4x256xi1>
    %19 = arith.andi %18, %12 : vector<4x256xi1>
    %20 = vector.broadcast %8 : i32 to vector<4x256xi32>
    %21 = arith.addi %10, %20 : vector<4x256xi32>
    %22 = arith.select %19, %21, %10 : vector<4x256xi1>, vector<4x256xi32>
    %c2_i32 = arith.constant 2 : i32
    %23 = vector.broadcast %c2_i32 : i32 to vector<4x256xi32>
    %24 = arith.cmpi sge, %22, %23 : vector<4x256xi32>
    %c1_i32_9 = arith.constant 1 : i32
    %25 = vector.broadcast %c1_i32_9 : i32 to vector<4x256xi32>
    %26 = arith.cmpi sge, %22, %25 : vector<4x256xi32>
    %c15_i32 = arith.constant 15 : i32
    %27 = vector.broadcast %c15_i32 : i32 to vector<4x256xi32>
    %28 = arith.cmpi slt, %22, %27 : vector<4x256xi32>
    %c14_i32 = arith.constant 14 : i32
    %29 = vector.broadcast %c14_i32 : i32 to vector<4x256xi32>
    %30 = arith.cmpi slt, %22, %29 : vector<4x256xi32>
    %c0_10 = arith.constant 0 : index
    %c94 = arith.constant 94 : index
    %31 = vector.load %arg6[%c0_10, %c94] : memref<4x512xf32, #tpu.memory_space<vmem>>, vector<4x256xf32>
    %cst_11 = arith.constant 0.000000e+00 : f32
    %32 = vector.broadcast %cst_11 : f32 to vector<4x256xf32>
    %33 = arith.select %24, %31, %32 : vector<4x256xi1>, vector<4x256xf32>
    %c0_12 = arith.constant 0 : index
    %c0_13 = arith.constant 0 : index
    %34 = vector.load %arg7[%c0_12, %c0_13] : memref<100x256xf32, #tpu.memory_space<vmem>>, vector<4x256xf32>
    tpu.vector_store %arg7[%c0_12, %c0_13], %33 {strides = array<i32>} : memref<100x256xf32, #tpu.memory_space<vmem>>, vector<4x256xf32>,
    %c0_14 = arith.constant 0 : index
    %c95 = arith.constant 95 : index
    %35 = vector.load %arg6[%c0_14, %c95] : memref<4x512xf32, #tpu.memory_space<vmem>>, vector<4x256xf32>
    %cst_15 = arith.constant 0.000000e+00 : f32
    %36 = vector.broadcast %cst_15 : f32 to vector<4x256xf32>
    %37 = arith.select %26, %35, %36 : vector<4x256xi1>, vector<4x256xf32>
    %c4 = arith.constant 4 : index
    %c0_16 = arith.constant 0 : index
    %38 = vector.load %arg7[%c4, %c0_16] : memref<100x256xf32, #tpu.memory_space<vmem>>, vector<4x256xf32>
    tpu.vector_store %arg7[%c4, %c0_16], %37 {strides = array<i32>} : memref<100x256xf32, #tpu.memory_space<vmem>>, vector<4x256xf32>,
    %c0_17 = arith.constant 0 : index
    %c96 = arith.constant 96 : index
    %39 = vector.load %arg6[%c0_17, %c96] : memref<4x512xf32, #tpu.memory_space<vmem>>, vector<4x256xf32>
    %c8 = arith.constant 8 : index
    %c0_18 = arith.constant 0 : index
    %40 = vector.load %arg7[%c8, %c0_18] : memref<100x256xf32, #tpu.memory_space<vmem>>, vector<4x256xf32>
    tpu.vector_store %arg7[%c8, %c0_18], %39 {strides = array<i32>} : memref<100x256xf32, #tpu.memory_space<vmem>>, vector<4x256xf32>,
    %c0_19 = arith.constant 0 : index
    %c97 = arith.constant 97 : index
    %41 = vector.load %arg6[%c0_19, %c97] : memref<4x512xf32, #tpu.memory_space<vmem>>, vector<4x256xf32>
    %cst_20 = arith.constant 0.000000e+00 : f32
    %42 = vector.broadcast %cst_20 : f32 to vector<4x256xf32>
    %43 = arith.select %28, %41, %42 : vector<4x256xi1>, vector<4x256xf32>
    %c12 = arith.constant 12 : index
    %c0_21 = arith.constant 0 : index
    %44 = vector.load %arg7[%c12, %c0_21] : memref<100x256xf32, #tpu.memory_space<vmem>>, vector<4x256xf32>
    tpu.vector_store %arg7[%c12, %c0_21], %43 {strides = array<i32>} : memref<100x256xf32, #tpu.memory_space<vmem>>, vector<4x256xf32>,
    %c0_22 = arith.constant 0 : index
    %c98 = arith.constant 98 : index
    %45 = vector.load %arg6[%c0_22, %c98] : memref<4x512xf32, #tpu.memory_space<vmem>>, vector<4x256xf32>
    %cst_23 = arith.constant 0.000000e+00 : f32
    %46 = vector.broadcast %cst_23 : f32 to vector<4x256xf32>
    %47 = arith.select %30, %45, %46 : vector<4x256xi1>, vector<4x256xf32>
    %c16 = arith.constant 16 : index
    %c0_24 = arith.constant 0 : index
    %48 = vector.load %arg7[%c16, %c0_24] : memref<100x256xf32, #tpu.memory_space<vmem>>, vector<4x256xf32>
    tpu.vector_store %arg7[%c16, %c0_24], %47 {strides = array<i32>} : memref<100x256xf32, #tpu.memory_space<vmem>>, vector<4x256xf32>,
    %c0_25 = arith.constant 0 : index
    %c110 = arith.constant 110 : index
    %49 = vector.load %arg6[%c0_25, %c110] : memref<4x512xf32, #tpu.memory_space<vmem>>, vector<4x256xf32>
    %cst_26 = arith.constant 0.000000e+00 : f32
    %50 = vector.broadcast %cst_26 : f32 to vector<4x256xf32>
    %51 = arith.select %24, %49, %50 : vector<4x256xi1>, vector<4x256xf32>
    %c20 = arith.constant 20 : index
    %c0_27 = arith.constant 0 : index
    %52 = vector.load %arg7[%c20, %c0_27] : memref<100x256xf32, #tpu.memory_space<vmem>>, vector<4x256xf32>
    tpu.vector_store %arg7[%c20, %c0_27], %51 {strides = array<i32>} : memref<100x256xf32, #tpu.memory_space<vmem>>, vector<4x256xf32>,
    %c0_28 = arith.constant 0 : index
    %c111 = arith.constant 111 : index
    %53 = vector.load %arg6[%c0_28, %c111] : memref<4x512xf32, #tpu.memory_space<vmem>>, vector<4x256xf32>
    %cst_29 = arith.constant 0.000000e+00 : f32
    %54 = vector.broadcast %cst_29 : f32 to vector<4x256xf32>
    %55 = arith.select %26, %53, %54 : vector<4x256xi1>, vector<4x256xf32>
    %c24 = arith.constant 24 : index
    %c0_30 = arith.constant 0 : index
    %56 = vector.load %arg7[%c24, %c0_30] : memref<100x256xf32, #tpu.memory_space<vmem>>, vector<4x256xf32>
    tpu.vector_store %arg7[%c24, %c0_30], %55 {strides = array<i32>} : memref<100x256xf32, #tpu.memory_space<vmem>>, vector<4x256xf32>,
    %c0_31 = arith.constant 0 : index
    %c112 = arith.constant 112 : index
    %57 = vector.load %arg6[%c0_31, %c112] : memref<4x512xf32, #tpu.memory_space<vmem>>, vector<4x256xf32>
    %c28 = arith.constant 28 : index
    %c0_32 = arith.constant 0 : index
    %58 = vector.load %arg7[%c28, %c0_32] : memref<100x256xf32, #tpu.memory_space<vmem>>, vector<4x256xf32>
    tpu.vector_store %arg7[%c28, %c0_32], %57 {strides = array<i32>} : memref<100x256xf32, #tpu.memory_space<vmem>>, vector<4x256xf32>,
    %c0_33 = arith.constant 0 : index
    %c113 = arith.constant 113 : index
    %59 = vector.load %arg6[%c0_33, %c113] : memref<4x512xf32, #tpu.memory_space<vmem>>, vector<4x256xf32>
    %cst_34 = arith.constant 0.000000e+00 : f32
    %60 = vector.broadcast %cst_34 : f32 to vector<4x256xf32>
    %61 = arith.select %28, %59, %60 : vector<4x256xi1>, vector<4x256xf32>
    %c32 = arith.constant 32 : index
    %c0_35 = arith.constant 0 : index
    %62 = vector.load %arg7[%c32, %c0_35] : memref<100x256xf32, #tpu.memory_space<vmem>>, vector<4x256xf32>
    tpu.vector_store %arg7[%c32, %c0_35], %61 {strides = array<i32>} : memref<100x256xf32, #tpu.memory_space<vmem>>, vector<4x256xf32>,
    %c0_36 = arith.constant 0 : index
    %c114 = arith.constant 114 : index
    %63 = vector.load %arg6[%c0_36, %c114] : memref<4x512xf32, #tpu.memory_space<vmem>>, vector<4x256xf32>
    %cst_37 = arith.constant 0.000000e+00 : f32
    %64 = vector.broadcast %cst_37 : f32 to vector<4x256xf32>
    %65 = arith.select %30, %63, %64 : vector<4x256xi1>, vector<4x256xf32>
    %c36 = arith.constant 36 : index
    %c0_38 = arith.constant 0 : index
    %66 = vector.load %arg7[%c36, %c0_38] : memref<100x256xf32, #tpu.memory_space<vmem>>, vector<4x256xf32>
    tpu.vector_store %arg7[%c36, %c0_38], %65 {strides = array<i32>} : memref<100x256xf32, #tpu.memory_space<vmem>>, vector<4x256xf32>,
    %c0_39 = arith.constant 0 : index
    %c126 = arith.constant 126 : index
    %67 = vector.load %arg6[%c0_39, %c126] : memref<4x512xf32, #tpu.memory_space<vmem>>, vector<4x256xf32>
    %cst_40 = arith.constant 0.000000e+00 : f32
    %68 = vector.broadcast %cst_40 : f32 to vector<4x256xf32>
    %69 = arith.select %24, %67, %68 : vector<4x256xi1>, vector<4x256xf32>
    %c40 = arith.constant 40 : index
    %c0_41 = arith.constant 0 : index
    %70 = vector.load %arg7[%c40, %c0_41] : memref<100x256xf32, #tpu.memory_space<vmem>>, vector<4x256xf32>
    tpu.vector_store %arg7[%c40, %c0_41], %69 {strides = array<i32>} : memref<100x256xf32, #tpu.memory_space<vmem>>, vector<4x256xf32>,
    %c0_42 = arith.constant 0 : index
    %c127 = arith.constant 127 : index
    %71 = vector.load %arg6[%c0_42, %c127] : memref<4x512xf32, #tpu.memory_space<vmem>>, vector<4x256xf32>
    %cst_43 = arith.constant 0.000000e+00 : f32
    %72 = vector.broadcast %cst_43 : f32 to vector<4x256xf32>
    %73 = arith.select %26, %71, %72 : vector<4x256xi1>, vector<4x256xf32>
    %c44 = arith.constant 44 : index
    %c0_44 = arith.constant 0 : index
    %74 = vector.load %arg7[%c44, %c0_44] : memref<100x256xf32, #tpu.memory_space<vmem>>, vector<4x256xf32>
    tpu.vector_store %arg7[%c44, %c0_44], %73 {strides = array<i32>} : memref<100x256xf32, #tpu.memory_space<vmem>>, vector<4x256xf32>,
    %c0_45 = arith.constant 0 : index
    %c128_46 = arith.constant 128 : index
    %75 = vector.load %arg6[%c0_45, %c128_46] : memref<4x512xf32, #tpu.memory_space<vmem>>, vector<4x256xf32>
    %c48 = arith.constant 48 : index
    %c0_47 = arith.constant 0 : index
    %76 = vector.load %arg7[%c48, %c0_47] : memref<100x256xf32, #tpu.memory_space<vmem>>, vector<4x256xf32>
    tpu.vector_store %arg7[%c48, %c0_47], %75 {strides = array<i32>} : memref<100x256xf32, #tpu.memory_space<vmem>>, vector<4x256xf32>,
    %c0_48 = arith.constant 0 : index
    %c129 = arith.constant 129 : index
    %77 = vector.load %arg6[%c0_48, %c129] : memref<4x512xf32, #tpu.memory_space<vmem>>, vector<4x256xf32>
    %cst_49 = arith.constant 0.000000e+00 : f32
    %78 = vector.broadcast %cst_49 : f32 to vector<4x256xf32>
    %79 = arith.select %28, %77, %78 : vector<4x256xi1>, vector<4x256xf32>
    %c52 = arith.constant 52 : index
    %c0_50 = arith.constant 0 : index
    %80 = vector.load %arg7[%c52, %c0_50] : memref<100x256xf32, #tpu.memory_space<vmem>>, vector<4x256xf32>
    tpu.vector_store %arg7[%c52, %c0_50], %79 {strides = array<i32>} : memref<100x256xf32, #tpu.memory_space<vmem>>, vector<4x256xf32>,
    %c0_51 = arith.constant 0 : index
    %c130 = arith.constant 130 : index
    %81 = vector.load %arg6[%c0_51, %c130] : memref<4x512xf32, #tpu.memory_space<vmem>>, vector<4x256xf32>
    %cst_52 = arith.constant 0.000000e+00 : f32
    %82 = vector.broadcast %cst_52 : f32 to vector<4x256xf32>
    %83 = arith.select %30, %81, %82 : vector<4x256xi1>, vector<4x256xf32>
    %c56 = arith.constant 56 : index
    %c0_53 = arith.constant 0 : index
    %84 = vector.load %arg7[%c56, %c0_53] : memref<100x256xf32, #tpu.memory_space<vmem>>, vector<4x256xf32>
    tpu.vector_store %arg7[%c56, %c0_53], %83 {strides = array<i32>} : memref<100x256xf32, #tpu.memory_space<vmem>>, vector<4x256xf32>,
    %c0_54 = arith.constant 0 : index
    %c142 = arith.constant 142 : index
    %85 = vector.load %arg6[%c0_54, %c142] : memref<4x512xf32, #tpu.memory_space<vmem>>, vector<4x256xf32>
    %cst_55 = arith.constant 0.000000e+00 : f32
    %86 = vector.broadcast %cst_55 : f32 to vector<4x256xf32>
    %87 = arith.select %24, %85, %86 : vector<4x256xi1>, vector<4x256xf32>
    %c60 = arith.constant 60 : index
    %c0_56 = arith.constant 0 : index
    %88 = vector.load %arg7[%c60, %c0_56] : memref<100x256xf32, #tpu.memory_space<vmem>>, vector<4x256xf32>
    tpu.vector_store %arg7[%c60, %c0_56], %87 {strides = array<i32>} : memref<100x256xf32, #tpu.memory_space<vmem>>, vector<4x256xf32>,
    %c0_57 = arith.constant 0 : index
    %c143 = arith.constant 143 : index
    %89 = vector.load %arg6[%c0_57, %c143] : memref<4x512xf32, #tpu.memory_space<vmem>>, vector<4x256xf32>
    %cst_58 = arith.constant 0.000000e+00 : f32
    %90 = vector.broadcast %cst_58 : f32 to vector<4x256xf32>
    %91 = arith.select %26, %89, %90 : vector<4x256xi1>, vector<4x256xf32>
    %c64 = arith.constant 64 : index
    %c0_59 = arith.constant 0 : index
    %92 = vector.load %arg7[%c64, %c0_59] : memref<100x256xf32, #tpu.memory_space<vmem>>, vector<4x256xf32>
    tpu.vector_store %arg7[%c64, %c0_59], %91 {strides = array<i32>} : memref<100x256xf32, #tpu.memory_space<vmem>>, vector<4x256xf32>,
    %c0_60 = arith.constant 0 : index
    %c144 = arith.constant 144 : index
    %93 = vector.load %arg6[%c0_60, %c144] : memref<4x512xf32, #tpu.memory_space<vmem>>, vector<4x256xf32>
    %c68 = arith.constant 68 : index
    %c0_61 = arith.constant 0 : index
    %94 = vector.load %arg7[%c68, %c0_61] : memref<100x256xf32, #tpu.memory_space<vmem>>, vector<4x256xf32>
    tpu.vector_store %arg7[%c68, %c0_61], %93 {strides = array<i32>} : memref<100x256xf32, #tpu.memory_space<vmem>>, vector<4x256xf32>,
    %c0_62 = arith.constant 0 : index
    %c145 = arith.constant 145 : index
    %95 = vector.load %arg6[%c0_62, %c145] : memref<4x512xf32, #tpu.memory_space<vmem>>, vector<4x256xf32>
    %cst_63 = arith.constant 0.000000e+00 : f32
    %96 = vector.broadcast %cst_63 : f32 to vector<4x256xf32>
    %97 = arith.select %28, %95, %96 : vector<4x256xi1>, vector<4x256xf32>
    %c72 = arith.constant 72 : index
    %c0_64 = arith.constant 0 : index
    %98 = vector.load %arg7[%c72, %c0_64] : memref<100x256xf32, #tpu.memory_space<vmem>>, vector<4x256xf32>
    tpu.vector_store %arg7[%c72, %c0_64], %97 {strides = array<i32>} : memref<100x256xf32, #tpu.memory_space<vmem>>, vector<4x256xf32>,
    %c0_65 = arith.constant 0 : index
    %c146 = arith.constant 146 : index
    %99 = vector.load %arg6[%c0_65, %c146] : memref<4x512xf32, #tpu.memory_space<vmem>>, vector<4x256xf32>
    %cst_66 = arith.constant 0.000000e+00 : f32
    %100 = vector.broadcast %cst_66 : f32 to vector<4x256xf32>
    %101 = arith.select %30, %99, %100 : vector<4x256xi1>, vector<4x256xf32>
    %c76 = arith.constant 76 : index
    %c0_67 = arith.constant 0 : index
    %102 = vector.load %arg7[%c76, %c0_67] : memref<100x256xf32, #tpu.memory_space<vmem>>, vector<4x256xf32>
    tpu.vector_store %arg7[%c76, %c0_67], %101 {strides = array<i32>} : memref<100x256xf32, #tpu.memory_space<vmem>>, vector<4x256xf32>,
    %c0_68 = arith.constant 0 : index
    %c158 = arith.constant 158 : index
    %103 = vector.load %arg6[%c0_68, %c158] : memref<4x512xf32, #tpu.memory_space<vmem>>, vector<4x256xf32>
    %cst_69 = arith.constant 0.000000e+00 : f32
    %104 = vector.broadcast %cst_69 : f32 to vector<4x256xf32>
    %105 = arith.select %24, %103, %104 : vector<4x256xi1>, vector<4x256xf32>
    %c80 = arith.constant 80 : index
    %c0_70 = arith.constant 0 : index
    %106 = vector.load %arg7[%c80, %c0_70] : memref<100x256xf32, #tpu.memory_space<vmem>>, vector<4x256xf32>
    tpu.vector_store %arg7[%c80, %c0_70], %105 {strides = array<i32>} : memref<100x256xf32, #tpu.memory_space<vmem>>, vector<4x256xf32>,
    %c0_71 = arith.constant 0 : index
    %c159 = arith.constant 159 : index
    %107 = vector.load %arg6[%c0_71, %c159] : memref<4x512xf32, #tpu.memory_space<vmem>>, vector<4x256xf32>
    %cst_72 = arith.constant 0.000000e+00 : f32
    %108 = vector.broadcast %cst_72 : f32 to vector<4x256xf32>
    %109 = arith.select %26, %107, %108 : vector<4x256xi1>, vector<4x256xf32>
    %c84 = arith.constant 84 : index
    %c0_73 = arith.constant 0 : index
    %110 = vector.load %arg7[%c84, %c0_73] : memref<100x256xf32, #tpu.memory_space<vmem>>, vector<4x256xf32>
    tpu.vector_store %arg7[%c84, %c0_73], %109 {strides = array<i32>} : memref<100x256xf32, #tpu.memory_space<vmem>>, vector<4x256xf32>,
    %c0_74 = arith.constant 0 : index
    %c160 = arith.constant 160 : index
    %111 = vector.load %arg6[%c0_74, %c160] : memref<4x512xf32, #tpu.memory_space<vmem>>, vector<4x256xf32>
    %c88 = arith.constant 88 : index
    %c0_75 = arith.constant 0 : index
    %112 = vector.load %arg7[%c88, %c0_75] : memref<100x256xf32, #tpu.memory_space<vmem>>, vector<4x256xf32>
    tpu.vector_store %arg7[%c88, %c0_75], %111 {strides = array<i32>} : memref<100x256xf32, #tpu.memory_space<vmem>>, vector<4x256xf32>,
    %c0_76 = arith.constant 0 : index
    %c161 = arith.constant 161 : index
    %113 = vector.load %arg6[%c0_76, %c161] : memref<4x512xf32, #tpu.memory_space<vmem>>, vector<4x256xf32>
    %cst_77 = arith.constant 0.000000e+00 : f32
    %114 = vector.broadcast %cst_77 : f32 to vector<4x256xf32>
    %115 = arith.select %28, %113, %114 : vector<4x256xi1>, vector<4x256xf32>
    %c92 = arith.constant 92 : index
    %c0_78 = arith.constant 0 : index
    %116 = vector.load %arg7[%c92, %c0_78] : memref<100x256xf32, #tpu.memory_space<vmem>>, vector<4x256xf32>
    tpu.vector_store %arg7[%c92, %c0_78], %115 {strides = array<i32>} : memref<100x256xf32, #tpu.memory_space<vmem>>, vector<4x256xf32>,
    %c0_79 = arith.constant 0 : index
    %c162 = arith.constant 162 : index
    %117 = vector.load %arg6[%c0_79, %c162] : memref<4x512xf32, #tpu.memory_space<vmem>>, vector<4x256xf32>
    %cst_80 = arith.constant 0.000000e+00 : f32
    %118 = vector.broadcast %cst_80 : f32 to vector<4x256xf32>
    %119 = arith.select %30, %117, %118 : vector<4x256xi1>, vector<4x256xf32>
    %c96_81 = arith.constant 96 : index
    %c0_82 = arith.constant 0 : index
    %120 = vector.load %arg7[%c96_81, %c0_82] : memref<100x256xf32, #tpu.memory_space<vmem>>, vector<4x256xf32>
    tpu.vector_store %arg7[%c96_81, %c0_82], %119 {strides = array<i32>} : memref<100x256xf32, #tpu.memory_space<vmem>>, vector<4x256xf32>,
    %c0_83 = arith.constant 0 : index
    %c0_84 = arith.constant 0 : index
    %121 = vector.load %arg2[%c0_83, %c0_84] : memref<24x100xf32, #tpu.memory_space<vmem>>, vector<24x100xf32>
    %c0_85 = arith.constant 0 : index
    %c0_86 = arith.constant 0 : index
    %122 = vector.load %arg7[%c0_85, %c0_86] : memref<100x256xf32, #tpu.memory_space<vmem>>, vector<100x256xf32>
    %cst_87 = arith.constant dense<0.000000e+00> : vector<24x256xf32>
    %123 = tpu.matmul %121, %122, %cst_87 {dimension_numbers = #tpu.dot_dimension_numbers<[1], [0], [0], [1], [0, 0, 1, 1], [], []>} : vector<24x100xf32>, vector<100x256xf32>, vector<24x256xf32> -> vector<24x256xf32>
    %c0_88 = arith.constant 0 : index
    %c0_89 = arith.constant 0 : index
    %124 = vector.load %arg3[%c0_88, %c0_89] : memref<24x1xf32, #tpu.memory_space<vmem>>, vector<24x1xf32>
    %125 = vector.broadcast %124 : vector<24x1xf32> to vector<24x256xf32>
    %126 = arith.mulf %123, %125 : vector<24x256xf32>
    %c0_90 = arith.constant 0 : index
    %c0_91 = arith.constant 0 : index
    %127 = vector.load %arg4[%c0_90, %c0_91] : memref<24x1xf32, #tpu.memory_space<vmem>>, vector<24x1xf32>
    %128 = vector.broadcast %127 : vector<24x1xf32> to vector<24x256xf32>
    %129 = arith.addf %126, %128 : vector<24x256xf32>
    %cst_92 = arith.constant 0.000000e+00 : f32
    %130 = vector.broadcast %cst_92 : f32 to vector<24x256xf32>
    %131 = arith.maximumf %129, %130 : vector<24x256xf32>
    %c0_93 = arith.constant 0 : index
    %c0_94 = arith.constant 0 : index
    %c0_95 = arith.constant 0 : index
    %132 = vector.load %arg5[%c0_93, %c0_94, %c0_95] : memref<1x24x256xf32, #tpu.memory_space<vmem>>, vector<1x24x256xf32>
    %133 = vector.shape_cast %132 : vector<1x24x256xf32> to vector<24x256xf32>
    %134 = vector.shape_cast %131 : vector<24x256xf32> to vector<1x24x256xf32>
    tpu.vector_store %arg5[%c0_93, %c0_94, %c0_95], %134 {strides = array<i32>} : memref<1x24x256xf32, #tpu.memory_space<vmem>>, vector<1x24x256xf32>,
    return
  }
  func.func @transform_0(%arg0: i32) -> (i32, i32, i32) {
    %c0_i32 = arith.constant 0 : i32
    %c0_i32_0 = arith.constant 0 : i32
    %c0_i32_1 = arith.constant 0 : i32
    return %arg0, %c0_i32, %c0_i32_0 : i32, i32, i32
  }
  func.func @transform_1(%arg0: i32) -> (i32, i32) {
    %c0_i32 = arith.constant 0 : i32
    %c0_i32_0 = arith.constant 0 : i32
    %c0_i32_1 = arith.constant 0 : i32
    return %c0_i32, %c0_i32_0 : i32, i32
  }
  func.func @transform_2(%arg0: i32) -> (i32, i32) {
    %c0_i32 = arith.constant 0 : i32
    %c0_i32_0 = arith.constant 0 : i32
    %c0_i32_1 = arith.constant 0 : i32
    return %c0_i32, %c0_i32_0 : i32, i32
  }
  func.func @transform_3(%arg0: i32) -> (i32, i32) {
    %c0_i32 = arith.constant 0 : i32
    %c0_i32_0 = arith.constant 0 : i32
    %c0_i32_1 = arith.constant 0 : i32
    return %c0_i32, %c0_i32_0 : i32, i32
  }
  func.func @transform_4(%arg0: i32) -> (i32, i32, i32) {
    %c0_i32 = arith.constant 0 : i32
    %c0_i32_0 = arith.constant 0 : i32
    %c0_i32_1 = arith.constant 0 : i32
    return %arg0, %c0_i32, %c0_i32_0 : i32, i32, i32
  }
}

</mosaic_0001>

<llo_original>
// kernel: tpu_custom_call.1
$region0: #{tpu_custom_call.1}
  #allocation0 [shape = 'u32[]', space=smem, size = 0x4, offset = 0x4, fixed_abs, tag = 'smem constant byte address 0x4 - core index']
  #allocation1 [shape = 'u32[144,128]{1,0:T(1,128)}', space=vmem, size = 0x12000, scoped, tag = 'internal scratch']
  #allocation2 [shape = 'f32[4,512]{1,0:T(4,128)}', space=vmem, size = 0x2000, scoped, tag = 'scratch operand']
  #allocation3 [shape = 'f32[100,256]{1,0:T(8,128)}', space=vmem, size = 0x1a000, scoped, tag = 'scratch operand']
  %s0 = inlined_call_operand.vmem [shape: f32[2,4,256], index: 0, kind: input, shape index: {}]
  %s1 = inlined_call_operand.vmem [shape: f32[24,100], index: 1, kind: input, shape index: {}]
  %s2 = inlined_call_operand.vmem [shape: f32[24,1], index: 2, kind: input, shape index: {}]
  %s3 = inlined_call_operand.vmem [shape: f32[24,1], index: 3, kind: input, shape index: {}]
  %s4 = inlined_call_operand.hbm [shape: f32[2,24,256], index: 4, kind: output, shape index: {}]
  %s5 = sld [smem:[#allocation0]]
  $region49: #{tpu_custom_call.1} parent=0
    _
  %s7 = ssub.s32 1, %s5
  %s8 = scalar_select 0, %s7, %s5
  $region1: #{tpu_custom_call.1} parent=0
    #allocation4 [shape = 'u8[49152]{0}', space=vmem, size = 0xc000, scoped, tag = 'output window, operand 0']
    #allocation5 [shape = 's32[2]{0}', space=sflag, size = 0x8, scoped, tag = 'scoped memory for tpu_custom_call.1']
    %9 = vsyncpa [#allocation5], 0
    %s10 = scalar_lea.sflag [#allocation5], 1
    %11 = vsyncpa %s10, 0
    loop: start=0, step=1, limit=4
    $region2: #{tpu_custom_call.1} parent=1 // loop_pre_header
      _
    $region3: #{tpu_custom_call.1} parent=1 // loop_header
      %s13 = sphi 0, %s17
      %p14 = scmp.ge.s32.totalorder %s13, 4
      %s23 = sphi 0, %s25
      %s26 = sphi 0, %s23
      %s27 = sphi 0, %s26
      %s43 = sphi 0, %s27
      %s47 = sphi 0, %s47
      %s49 = sphi 0, %s47
      %s50 = sphi 0, %s49
      %s64 = sphi 0, %s50
      %s68 = sphi 0, %s68
      %s70 = sphi 0, %s68
      %s71 = sphi 0, %s70
      %s85 = sphi 0, %s71
      %s89 = sphi 0, %s89
      %s91 = sphi 0, %s89
      %s92 = sphi 0, %s91
      %s106 = sphi 0, %s92
      %s112 = sphi 0, %s114
      %s115 = sphi 0, %s112
      %s116 = sphi 0, %s115
      %s132 = sphi 0, %s116
    $region4: #{tpu_custom_call.1} parent=1 // loop_header_branch
      %16 = sbr.rel (%p14) target = $region8
    $region5: #{tpu_custom_call.1} parent=1 // loop_body
      %s18 = ssub.s32 %s13, 1
      %s19 = ssub.s32 %s13, 2
      %s20 = sadd.s32 %s13, 1
      %s21 = ssub.s32 %s13, %s20
      %p22 = scmp.eq.s32.totalorder %s21, 0
      %s24 = sadd.s32 %s23, 1
      %s25 = scalar_select %p22, %s23, %s24
      %p28 = pneg %p22
      %p29 = scmp.eq.s32.totalorder %s13, 1
      %p30 = por %p28, %p29
      %p31 = scmp.ne.s32.totalorder %s23, %s26
      %p32 = scmp.eq.s32.totalorder %s13, 0
      %p33 = por %p31, %p32
      %p34 = scmp.ne.s32.totalorder %s23, %s26
      %p35 = scmp.eq.s32.totalorder %s18, 1
      %p36 = por %p34, %p35
      %p37 = scmp.ne.s32.totalorder %s26, %s27
      %p38 = scmp.eq.s32.totalorder %s18, 0
      %p39 = por %p37, %p38
      %p40 = scmp.ne.s32.totalorder %s26, %s27
      %p41 = scmp.eq.s32.totalorder %s19, 1
      %p42 = por %p40, %p41
      %p44 = scmp.ne.s32.totalorder %s27, %s43
      %p45 = scmp.eq.s32.totalorder %s19, 0
      %p46 = por %p44, %p45
      %s48 = sadd.s32 %s47, 1
      %p51 = scmp.eq.s32.totalorder %s13, 1
      %p52 = scmp.ne.s32.totalorder %s47, %s49
      %p53 = scmp.eq.s32.totalorder %s13, 0
      %p54 = por %p52, %p53
      %p55 = scmp.ne.s32.totalorder %s47, %s49
      %p56 = scmp.eq.s32.totalorder %s18, 1
      %p57 = por %p55, %p56
      %p58 = scmp.ne.s32.totalorder %s49, %s50
      %p59 = scmp.eq.s32.totalorder %s18, 0
      %p60 = por %p58, %p59
      %p61 = scmp.ne.s32.totalorder %s49, %s50
      %p62 = scmp.eq.s32.totalorder %s19, 1
      %p63 = por %p61, %p62
      %p65 = scmp.ne.s32.totalorder %s50, %s64
      %p66 = scmp.eq.s32.totalorder %s19, 0
      %p67 = por %p65, %p66
      %s69 = sadd.s32 %s68, 1
      %p72 = scmp.eq.s32.totalorder %s13, 1
      %p73 = scmp.ne.s32.totalorder %s68, %s70
      %p74 = scmp.eq.s32.totalorder %s13, 0
      %p75 = por %p73, %p74
      %p76 = scmp.ne.s32.totalorder %s68, %s70
      %p77 = scmp.eq.s32.totalorder %s18, 1
      %p78 = por %p76, %p77
      %p79 = scmp.ne.s32.totalorder %s70, %s71
      %p80 = scmp.eq.s32.totalorder %s18, 0
      %p81 = por %p79, %p80
      %p82 = scmp.ne.s32.totalorder %s70, %s71
      %p83 = scmp.eq.s32.totalorder %s19, 1
      %p84 = por %p82, %p83
      %p86 = scmp.ne.s32.totalorder %s71, %s85
      %p87 = scmp.eq.s32.totalorder %s19, 0
      %p88 = por %p86, %p87
      %s90 = sadd.s32 %s89, 1
      %p93 = scmp.eq.s32.totalorder %s13, 1
      %p94 = scmp.ne.s32.totalorder %s89, %s91
      %p95 = scmp.eq.s32.totalorder %s13, 0
      %p96 = por %p94, %p95
      %p97 = scmp.ne.s32.totalorder %s89, %s91
      %p98 = scmp.eq.s32.totalorder %s18, 1
      %p99 = por %p97, %p98
      %p100 = scmp.ne.s32.totalorder %s91, %s92
      %p101 = scmp.eq.s32.totalorder %s18, 0
      %p102 = por %p100, %p101
      %p103 = scmp.ne.s32.totalorder %s91, %s92
      %p104 = scmp.eq.s32.totalorder %s19, 1
      %p105 = por %p103, %p104
      %p107 = scmp.ne.s32.totalorder %s92, %s106
      %p108 = scmp.eq.s32.totalorder %s19, 0
      %p109 = por %p107, %p108
      %s110 = ssub.s32 %s13, %s20
      %p111 = scmp.eq.s32.totalorder %s110, 0
      %s113 = sadd.s32 %s112, 1
      %s114 = scalar_select %p111, %s112, %s113
      %p117 = pneg %p111
      %p118 = scmp.eq.s32.totalorder %s13, 1
      %p119 = por %p117, %p118
      %p120 = scmp.ne.s32.totalorder %s112, %s115
      %p121 = scmp.eq.s32.totalorder %s13, 0
      %p122 = por %p120, %p121
      %p123 = scmp.ne.s32.totalorder %s112, %s115
      %p124 = scmp.eq.s32.totalorder %s18, 1
      %p125 = por %p123, %p124
      %p126 = scmp.ne.s32.totalorder %s115, %s116
      %p127 = scmp.eq.s32.totalorder %s18, 0
      %p128 = por %p126, %p127
      %p129 = scmp.ne.s32.totalorder %s115, %s116
      %p130 = scmp.eq.s32.totalorder %s19, 1
      %p131 = por %p129, %p130
      %p133 = scmp.ne.s32.totalorder %s116, %s132
      %p134 = scmp.eq.s32.totalorder %s19, 0
      %p135 = por %p133, %p134
      %p136 = scmp.le.s32.totalorder 1, %s13
      %p137 = scmp.lt.s32.totalorder %s13, 3
      %p138 = pnand %p136, %p137
      %p139 = pneg %p138
      // Predicated region
      $region9: #{tpu_custom_call.1} parent=5 // pred_check
        _
      $region10: #{tpu_custom_call.1} parent=5 // pred_check_branch
        %141 = sbr.rel (%p138) target = $region12
      $region11: #{tpu_custom_call.1} parent=5 // pred_region
        %s142 = ssub.s32 %s13, 1
        // Predicated region
        $region13: #{tpu_custom_call.1} parent=11 // pred_check
          %p143 = pneg %p60
        $region14: #{tpu_custom_call.1} parent=11 // pred_check_branch
          %145 = sbr.rel (%p143) target = $region16
        $region15: #{tpu_custom_call.1} parent=11 // pred_region
          _
        $region16: #{tpu_custom_call.1} parent=11 // pred_fallthru
          _
        // Predicated region
        $region17: #{tpu_custom_call.1} parent=11 // pred_check
          %p146 = pneg %p81
        $region18: #{tpu_custom_call.1} parent=11 // pred_check_branch
          %148 = sbr.rel (%p146) target = $region20
        $region19: #{tpu_custom_call.1} parent=11 // pred_region
          _
        $region20: #{tpu_custom_call.1} parent=11 // pred_fallthru
          _
        // Predicated region
        $region21: #{tpu_custom_call.1} parent=11 // pred_check
          %p149 = pneg %p102
        $region22: #{tpu_custom_call.1} parent=11 // pred_check_branch
          %151 = sbr.rel (%p149) target = $region24
        $region23: #{tpu_custom_call.1} parent=11 // pred_region
          _
        $region24: #{tpu_custom_call.1} parent=11 // pred_fallthru
          _
      $region12: #{tpu_custom_call.1} parent=5 // pred_fallthru
        _
      %p152 = scmp.lt.s32.totalorder %s13, 2
      // Predicated region
      $region25: #{tpu_custom_call.1} parent=5 // pred_check
        %p153 = pneg %p152
      $region26: #{tpu_custom_call.1} parent=5 // pred_check_branch
        %155 = sbr.rel (%p153) target = $region28
      $region27: #{tpu_custom_call.1} parent=5 // pred_region
        // Predicated region
        $region29: #{tpu_custom_call.1} parent=27 // pred_check
          %p156 = pneg %p33
        $region30: #{tpu_custom_call.1} parent=27 // pred_check_branch
          %158 = sbr.rel (%p156) target = $region32
        $region31: #{tpu_custom_call.1} parent=27 // pred_region
          %p159 = scmp.lt.s32.totalorder %s13, 1
          %s160 = scalar_select %p159, %s13, 1
          %s161 = smul.addr %s160, 2
          %s162 = smul.addr %s161, 4
          %s163 = scalar_lea.vmem %s0, %s162
        $region32: #{tpu_custom_call.1} parent=27 // pred_fallthru
          _
      $region28: #{tpu_custom_call.1} parent=5 // pred_fallthru
        _
      %p164 = scmp.le.s32.totalorder 1, %s13
      %p165 = scmp.lt.s32.totalorder %s13, 3
      %p166 = pnand %p164, %p165
      %p167 = pneg %p166
      // Predicated region
      $region33: #{tpu_custom_call.1} parent=5 // pred_check
        _
      $region34: #{tpu_custom_call.1} parent=5 // pred_check_branch
        %169 = sbr.rel (%p166) target = $region36
      $region35: #{tpu_custom_call.1} parent=5 // pred_region
        %s170 = ssub.s32 %s13, 1
        %p171 = scmp.lt.s32.totalorder %s18, 1
        %s172 = scalar_select %p171, %s18, 1
        %s173 = smul.addr %s172, 2
        %s174 = smul.addr %s173, 4
        %s175 = scalar_lea.vmem %s0, %s174
        %p176 = pneg %p39
        %p177 = pneg %p36
        %p178 = pneg %p60
        %p179 = pneg %p57
        %p180 = pneg %p81
        %p181 = pneg %p78
        %p182 = pneg %p102
        %p183 = pneg %p99
        %p184 = pneg %p128
        %p185 = pneg %p125
        %s186 = sand.u32 %s115, 1
        %s187 = scalar_lea.sflag [#allocation5], %s186
        %s188 = sand.u32 %s115, 1
        %s189 = smul.addr %s188, 48
        %s190 = scalar_lea.vmem [#allocation4], %s189
        %p191 = scmp.lt.s32.totalorder %s18, 1
        %s192 = scalar_select %p191, %s18, 1
        %s193 = smul.addr %s192, 2
        %s194 = smul.addr %s193, 4
        %s195 = scalar_lea.vmem %s0, %s194
        %196 = vst [vmem:[#allocation2] sm:$0xf] 0.0
        %197 = vst [vmem:[#allocation2 + $0xc] sm:$0xf] 0.0
        %v198 = vld [vmem:[%s195] sm:$0xff]
        %199 = vst [vmem:[#allocation2 + $0x4] sm:$0xff] %v198
        %v200 = vlaneseq
        %v201 = vand.u32 %v200, 127
        %v202 = vadd.s32 %v201, 128
        %vm203 = vcmp.lt.s32.totalorder %v201, 0
        %v204 = vsub.s32 0, %v201
        %v205 = vsel %vm203, %v204, %v201
        %v206 = vshrl.u32 %v205, 4
        %v207 = vand.u32 %v205, 15
        %v208 = vsub.s32 0, %v207
        %v209 = vsel %vm203, %v208, %v207
        %vm210 = vcmp.lt.s32.totalorder %v202, 0
        %v211 = vsub.s32 0, %v202
        %v212 = vsel %vm210, %v211, %v202
        %v213 = vshrl.u32 %v212, 4
        %v214 = vand.u32 %v212, 15
        %v215 = vsub.s32 0, %v214
        %v216 = vsel %vm210, %v215, %v214
        %vm217 = vcmp.ne.s32.totalorder %v209, 0
        %vm218 = vcmp.ne.s32.totalorder %v216, 0
        %vm219 = vcmp.lt.s32.totalorder %v209, 0
        %vm220 = vcmp.lt.s32.totalorder %v216, 0
        %vm221 = vmand %vm219, %vm217
        %vm222 = vmand %vm220, %vm218
        %v223 = vadd.s32 %v209, 16
        %v224 = vadd.s32 %v216, 16
        %v225 = vsel %vm221, %v223, %v209
        %v226 = vsel %vm222, %v224, %v216
        %vm227 = vcmp.ge.s32.totalorder %v225, 2
        %vm228 = vcmp.ge.s32.totalorder %v226, 2
        %vm229 = vcmp.ge.s32.totalorder %v225, 1
        %vm230 = vcmp.ge.s32.totalorder %v226, 1
        %vm231 = vcmp.lt.s32.totalorder %v225, 15
        %vm232 = vcmp.lt.s32.totalorder %v226, 15
        %vm233 = vcmp.lt.s32.totalorder %v225, 14
        %vm234 = vcmp.lt.s32.totalorder %v226, 14
        %v235 = vld [vmem:[#allocation2] sm:$0xff]
        %v236 = vld [vmem:[#allocation2 + $0x8] sm:$0xf]
        %v239 = vcombine.high %v235, %v235
        %240 = vrot.lane.b32.xlu0 %v235, 34
        %v241 = vpop.permute.xlu0 %240
        %242 = vrot.lane.b32.xlu0 %v239, 34
        %v243 = vpop.permute.xlu0 %242
        %244 = vrot.lane.b32.xlu0 %v236, 34
        %v245 = vpop.permute.xlu0 %244
        %vm246 = vcmask 277504
        %v247 = vsel %vm246, %v241, %v243
        %v248 = vsel %vm246, %v243, %v245
        %v251 = vsel %vm227, %v247, 0.0
        %v252 = vsel %vm228, %v248, 0.0
        %253 = vst [vmem:[#allocation3] sm:$0xf] %v251
        %254 = vst [vmem:[#allocation3 + $0x8] sm:$0xf] %v252
        %v255 = vld [vmem:[#allocation2] sm:$0xff]
        %v256 = vld [vmem:[#allocation2 + $0x8] sm:$0xf]
        %v259 = vcombine.high %v255, %v255
        %260 = vrot.lane.b32.xlu0 %v255, 33
        %v261 = vpop.permute.xlu0 %260
        %262 = vrot.lane.b32.xlu0 %v259, 33
        %v263 = vpop.permute.xlu0 %262
        %264 = vrot.lane.b32.xlu0 %v256, 33
        %v265 = vpop.permute.xlu0 %264
        %vm266 = vcmask 269312
        %v267 = vsel %vm266, %v261, %v263
        %v268 = vsel %vm266, %v263, %v265
        %v271 = vsel %vm229, %v267, 0.0
        %v272 = vsel %vm230, %v268, 0.0
        %v275 = vrot.slane %v271, 4
        %v276 = vrot.slane %v272, 4
        %279 = vst [vmem:[#allocation3] sm:$0xf0] %v275
        %280 = vst [vmem:[#allocation3 + $0x8] sm:$0xf0] %v276
        %v281 = vld [vmem:[#allocation2] sm:$0xff]
        %v282 = vld [vmem:[#allocation2 + $0x8] sm:$0xf]
        %v285 = vcombine.high %v281, %v281
        %286 = vrot.lane.b32.xlu0 %v281, 32
        %v287 = vpop.permute.xlu0 %286
        %288 = vrot.lane.b32.xlu0 %v285, 32
        %v289 = vpop.permute.xlu0 %288
        %290 = vrot.lane.b32.xlu0 %v282, 32
        %v291 = vpop.permute.xlu0 %290
        %vm292 = vcmask 261120
        %v293 = vsel %vm292, %v287, %v289
        %v294 = vsel %vm292, %v289, %v291
        %297 = vst [vmem:[#allocation3 + $0x10] sm:$0xf] %v293
        %298 = vst [vmem:[#allocation3 + $0x18] sm:$0xf] %v294
        %v299 = vld [vmem:[#allocation2] sm:$0xff]
        %v300 = vld [vmem:[#allocation2 + $0x8] sm:$0xf]
        %v303 = vcombine.high %v299, %v299
        %304 = vrot.lane.b32.xlu0 %v299, 31
        %v305 = vpop.permute.xlu0 %304
        %306 = vrot.lane.b32.xlu0 %v303, 31
        %v307 = vpop.permute.xlu0 %306
        %308 = vrot.lane.b32.xlu0 %v300, 31
        %v309 = vpop.permute.xlu0 %308
        %vm310 = vcmask 252928
        %v311 = vsel %vm310, %v305, %v307
        %v312 = vsel %vm310, %v307, %v309
        %v315 = vsel %vm231, %v311, 0.0
        %v316 = vsel %vm232, %v312, 0.0
        %v319 = vrot.slane %v315, 4
        %v320 = vrot.slane %v316, 4
        %323 = vst [vmem:[#allocation3 + $0x10] sm:$0xf0] %v319
        %324 = vst [vmem:[#allocation3 + $0x18] sm:$0xf0] %v320
        %v325 = vld [vmem:[#allocation2] sm:$0xff]
        %v326 = vld [vmem:[#allocation2 + $0x8] sm:$0xf]
        %v329 = vcombine.high %v325, %v325
        %330 = vrot.lane.b32.xlu0 %v325, 30
        %v331 = vpop.permute.xlu0 %330
        %332 = vrot.lane.b32.xlu0 %v329, 30
        %v333 = vpop.permute.xlu0 %332
        %334 = vrot.lane.b32.xlu0 %v326, 30
        %v335 = vpop.permute.xlu0 %334
        %vm336 = vcmask 244736
        %v337 = vsel %vm336, %v331, %v333
        %v338 = vsel %vm336, %v333, %v335
        %v341 = vsel %vm233, %v337, 0.0
        %v342 = vsel %vm234, %v338, 0.0
        %343 = vst [vmem:[#allocation3 + $0x20] sm:$0xf] %v341
        %344 = vst [vmem:[#allocation3 + $0x28] sm:$0xf] %v342
        %v345 = vld [vmem:[#allocation2] sm:$0xff]
        %v346 = vld [vmem:[#allocation2 + $0x8] sm:$0xf]
        %v349 = vcombine.high %v345, %v345
        %350 = vrot.lane.b32.xlu0 %v345, 18
        %v351 = vpop.permute.xlu0 %350
        %352 = vrot.lane.b32.xlu0 %v349, 18
        %v353 = vpop.permute.xlu0 %352
        %354 = vrot.lane.b32.xlu0 %v346, 18
        %v355 = vpop.permute.xlu0 %354
        %vm356 = vcmask 146432
        %v357 = vsel %vm356, %v351, %v353
        %v358 = vsel %vm356, %v353, %v355
        %v361 = vsel %vm227, %v357, 0.0
        %v362 = vsel %vm228, %v358, 0.0
        %v365 = vrot.slane %v361, 4
        %v366 = vrot.slane %v362, 4
        %369 = vst [vmem:[#allocation3 + $0x20] sm:$0xf0] %v365
        %370 = vst [vmem:[#allocation3 + $0x28] sm:$0xf0] %v366
        %v371 = vld [vmem:[#allocation2] sm:$0xff]
        %v372 = vld [vmem:[#allocation2 + $0x8] sm:$0xf]
        %v375 = vcombine.high %v371, %v371
        %376 = vrot.lane.b32.xlu0 %v371, 17
        %v377 = vpop.permute.xlu0 %376
        %378 = vrot.lane.b32.xlu0 %v375, 17
        %v379 = vpop.permute.xlu0 %378
        %380 = vrot.lane.b32.xlu0 %v372, 17
        %v381 = vpop.permute.xlu0 %380
        %vm382 = vcmask 138240
        %v383 = vsel %vm382, %v377, %v379
        %v384 = vsel %vm382, %v379, %v381
        %v387 = vsel %vm229, %v383, 0.0
        %v388 = vsel %vm230, %v384, 0.0
        %389 = vst [vmem:[#allocation3 + $0x30] sm:$0xf] %v387
        %390 = vst [vmem:[#allocation3 + $0x38] sm:$0xf] %v388
        %v391 = vld [vmem:[#allocation2] sm:$0xff]
        %v392 = vld [vmem:[#allocation2 + $0x8] sm:$0xf]
        %v395 = vcombine.low %v391, %v391
        %v396 = vcombine.low %v392, %v392
        %397 = vrot.lane.b32.xlu0 %v395, 16
        %v398 = vpop.permute.xlu0 %397
        %399 = vrot.lane.b32.xlu0 %v391, 16
        %v400 = vpop.permute.xlu0 %399
        %401 = vrot.lane.b32.xlu0 %v396, 16
        %v402 = vpop.permute.xlu0 %401
        %vm403 = vcmask 130048
        %v404 = vsel %vm403, %v398, %v400
        %v405 = vsel %vm403, %v400, %v402
        %408 = vst [vmem:[#allocation3 + $0x30] sm:$0xf0] %v404
        %409 = vst [vmem:[#allocation3 + $0x38] sm:$0xf0] %v405
        %v410 = vld [vmem:[#allocation2] sm:$0xff]
        %v411 = vld [vmem:[#allocation2 + $0x8] sm:$0xf]
        %v414 = vcombine.high %v410, %v410
        %415 = vrot.lane.b32.xlu0 %v410, 15
        %v416 = vpop.permute.xlu0 %415
        %417 = vrot.lane.b32.xlu0 %v414, 15
        %v418 = vpop.permute.xlu0 %417
        %419 = vrot.lane.b32.xlu0 %v411, 15
        %v420 = vpop.permute.xlu0 %419
        %vm421 = vcmask 121856
        %v422 = vsel %vm421, %v416, %v418
        %v423 = vsel %vm421, %v418, %v420
        %v426 = vsel %vm231, %v422, 0.0
        %v427 = vsel %vm232, %v423, 0.0
        %428 = vst [vmem:[#allocation3 + $0x40] sm:$0xf] %v426
        %429 = vst [vmem:[#allocation3 + $0x48] sm:$0xf] %v427
        %v430 = vld [vmem:[#allocation2] sm:$0xff]
        %v431 = vld [vmem:[#allocation2 + $0x8] sm:$0xf]
        %v434 = vcombine.high %v430, %v430
        %435 = vrot.lane.b32.xlu0 %v430, 14
        %v436 = vpop.permute.xlu0 %435
        %437 = vrot.lane.b32.xlu0 %v434, 14
        %v438 = vpop.permute.xlu0 %437
        %439 = vrot.lane.b32.xlu0 %v431, 14
        %v440 = vpop.permute.xlu0 %439
        %vm441 = vcmask 113664
        %v442 = vsel %vm441, %v436, %v438
        %v443 = vsel %vm441, %v438, %v440
        %v446 = vsel %vm233, %v442, 0.0
        %v447 = vsel %vm234, %v443, 0.0
        %v450 = vrot.slane %v446, 4
        %v451 = vrot.slane %v447, 4
        %454 = vst [vmem:[#allocation3 + $0x40] sm:$0xf0] %v450
        %455 = vst [vmem:[#allocation3 + $0x48] sm:$0xf0] %v451
        %v456 = vld [vmem:[#allocation2] sm:$0xff]
        %v457 = vld [vmem:[#allocation2 + $0x8] sm:$0xf]
        %v460 = vcombine.high %v456, %v456
        %461 = vrot.lane.b32.xlu0 %v456, 2
        %v462 = vpop.permute.xlu0 %461
        %463 = vrot.lane.b32.xlu0 %v460, 2
        %v464 = vpop.permute.xlu0 %463
        %465 = vrot.lane.b32.xlu0 %v457, 2
        %v466 = vpop.permute.xlu0 %465
        %vm467 = vcmask 15360
        %v468 = vsel %vm467, %v462, %v464
        %v469 = vsel %vm467, %v464, %v466
        %v472 = vsel %vm227, %v468, 0.0
        %v473 = vsel %vm228, %v469, 0.0
        %474 = vst [vmem:[#allocation3 + $0x50] sm:$0xf] %v472
        %475 = vst [vmem:[#allocation3 + $0x58] sm:$0xf] %v473
        %v476 = vld [vmem:[#allocation2] sm:$0xff]
        %v477 = vld [vmem:[#allocation2 + $0x8] sm:$0xf]
        %v480 = vcombine.high %v476, %v476
        %481 = vrot.lane.b32.xlu0 %v476, 1
        %v482 = vpop.permute.xlu0 %481
        %483 = vrot.lane.b32.xlu0 %v480, 1
        %v484 = vpop.permute.xlu0 %483
        %485 = vrot.lane.b32.xlu0 %v477, 1
        %v486 = vpop.permute.xlu0 %485
        %vm487 = vcmask 7168
        %v488 = vsel %vm487, %v482, %v484
        %v489 = vsel %vm487, %v484, %v486
        %v492 = vsel %vm229, %v488, 0.0
        %v493 = vsel %vm230, %v489, 0.0
        %v496 = vrot.slane %v492, 4
        %v497 = vrot.slane %v493, 4
        %500 = vst [vmem:[#allocation3 + $0x50] sm:$0xf0] %v496
        %501 = vst [vmem:[#allocation3 + $0x58] sm:$0xf0] %v497
        %v502 = vld [vmem:[#allocation2 + $0x4] sm:$0xff]
        %v504 = vcombine.high %v502, %v502
        %506 = vst [vmem:[#allocation3 + $0x60] sm:$0xf] %v502
        %507 = vst [vmem:[#allocation3 + $0x68] sm:$0xf] %v504
        %v508 = vld [vmem:[#allocation2 + $0x4] sm:$0xff]
        %v509 = vld [vmem:[#allocation2 + $0xc] sm:$0xf]
        %v512 = vcombine.high %v508, %v508
        %513 = vrot.lane.b32.xlu0 %v508, 127
        %v514 = vpop.permute.xlu0 %513
        %515 = vrot.lane.b32.xlu0 %v512, 127
        %v516 = vpop.permute.xlu0 %515
        %517 = vrot.lane.b32.xlu0 %v509, 127
        %v518 = vpop.permute.xlu0 %517
        %vm519 = vcmask 1039360
        %v520 = vsel %vm519, %v514, %v516
        %v521 = vsel %vm519, %v516, %v518
        %v524 = vsel %vm231, %v520, 0.0
        %v525 = vsel %vm232, %v521, 0.0
        %v528 = vrot.slane %v524, 4
        %v529 = vrot.slane %v525, 4
        %532 = vst [vmem:[#allocation3 + $0x60] sm:$0xf0] %v528
        %533 = vst [vmem:[#allocation3 + $0x68] sm:$0xf0] %v529
        %v534 = vld [vmem:[#allocation2 + $0x4] sm:$0xff]
        %v535 = vld [vmem:[#allocation2 + $0xc] sm:$0xf]
        %v538 = vcombine.high %v534, %v534
        %539 = vrot.lane.b32.xlu0 %v534, 126
        %v540 = vpop.permute.xlu0 %539
        %541 = vrot.lane.b32.xlu0 %v538, 126
        %v542 = vpop.permute.xlu0 %541
        %543 = vrot.lane.b32.xlu0 %v535, 126
        %v544 = vpop.permute.xlu0 %543
        %vm545 = vcmask 1031168
        %v546 = vsel %vm545, %v540, %v542
        %v547 = vsel %vm545, %v542, %v544
        %v550 = vsel %vm233, %v546, 0.0
        %v551 = vsel %vm234, %v547, 0.0
        %552 = vst [vmem:[#allocation3 + $0x70] sm:$0xf] %v550
        %553 = vst [vmem:[#allocation3 + $0x78] sm:$0xf] %v551
        %v554 = vld [vmem:[#allocation2 + $0x4] sm:$0xff]
        %v555 = vld [vmem:[#allocation2 + $0xc] sm:$0xf]
        %v558 = vcombine.high %v554, %v554
        %559 = vrot.lane.b32.xlu0 %v554, 114
        %v560 = vpop.permute.xlu0 %559
        %561 = vrot.lane.b32.xlu0 %v558, 114
        %v562 = vpop.permute.xlu0 %561
        %563 = vrot.lane.b32.xlu0 %v555, 114
        %v564 = vpop.permute.xlu0 %563
        %vm565 = vcmask 932864
        %v566 = vsel %vm565, %v560, %v562
        %v567 = vsel %vm565, %v562, %v564
        %v570 = vsel %vm227, %v566, 0.0
        %v571 = vsel %vm228, %v567, 0.0
        %v574 = vrot.slane %v570, 4
        %v575 = vrot.slane %v571, 4
        %578 = vst [vmem:[#allocation3 + $0x70] sm:$0xf0] %v574
        %579 = vst [vmem:[#allocation3 + $0x78] sm:$0xf0] %v575
        %v580 = vld [vmem:[#allocation2 + $0x4] sm:$0xff]
        %v581 = vld [vmem:[#allocation2 + $0xc] sm:$0xf]
        %v584 = vcombine.high %v580, %v580
        %585 = vrot.lane.b32.xlu0 %v580, 113
        %v586 = vpop.permute.xlu0 %585
        %587 = vrot.lane.b32.xlu0 %v584, 113
        %v588 = vpop.permute.xlu0 %587
        %589 = vrot.lane.b32.xlu0 %v581, 113
        %v590 = vpop.permute.xlu0 %589
        %vm591 = vcmask 924672
        %v592 = vsel %vm591, %v586, %v588
        %v593 = vsel %vm591, %v588, %v590
        %v596 = vsel %vm229, %v592, 0.0
        %v597 = vsel %vm230, %v593, 0.0
        %598 = vst [vmem:[#allocation3 + $0x80] sm:$0xf] %v596
        %599 = vst [vmem:[#allocation3 + $0x88] sm:$0xf] %v597
        %v600 = vld [vmem:[#allocation2 + $0x4] sm:$0xff]
        %v601 = vld [vmem:[#allocation2 + $0xc] sm:$0xf]
        %v604 = vcombine.low %v600, %v600
        %v605 = vcombine.low %v601, %v601
        %606 = vrot.lane.b32.xlu0 %v604, 112
        %v607 = vpop.permute.xlu0 %606
        %608 = vrot.lane.b32.xlu0 %v600, 112
        %v609 = vpop.permute.xlu0 %608
        %610 = vrot.lane.b32.xlu0 %v605, 112
        %v611 = vpop.permute.xlu0 %610
        %vm612 = vcmask 916480
        %v613 = vsel %vm612, %v607, %v609
        %v614 = vsel %vm612, %v609, %v611
        %617 = vst [vmem:[#allocation3 + $0x80] sm:$0xf0] %v613
        %618 = vst [vmem:[#allocation3 + $0x88] sm:$0xf0] %v614
        %v619 = vld [vmem:[#allocation2 + $0x4] sm:$0xff]
        %v620 = vld [vmem:[#allocation2 + $0xc] sm:$0xf]
        %v623 = vcombine.high %v619, %v619
        %624 = vrot.lane.b32.xlu0 %v619, 111
        %v625 = vpop.permute.xlu0 %624
        %626 = vrot.lane.b32.xlu0 %v623, 111
        %v627 = vpop.permute.xlu0 %626
        %628 = vrot.lane.b32.xlu0 %v620, 111
        %v629 = vpop.permute.xlu0 %628
        %vm630 = vcmask 908288
        %v631 = vsel %vm630, %v625, %v627
        %v632 = vsel %vm630, %v627, %v629
        %v635 = vsel %vm231, %v631, 0.0
        %v636 = vsel %vm232, %v632, 0.0
        %637 = vst [vmem:[#allocation3 + $0x90] sm:$0xf] %v635
        %638 = vst [vmem:[#allocation3 + $0x98] sm:$0xf] %v636
        %v639 = vld [vmem:[#allocation2 + $0x4] sm:$0xff]
        %v640 = vld [vmem:[#allocation2 + $0xc] sm:$0xf]
        %v643 = vcombine.high %v639, %v639
        %644 = vrot.lane.b32.xlu0 %v639, 110
        %v645 = vpop.permute.xlu0 %644
        %646 = vrot.lane.b32.xlu0 %v643, 110
        %v647 = vpop.permute.xlu0 %646
        %648 = vrot.lane.b32.xlu0 %v640, 110
        %v649 = vpop.permute.xlu0 %648
        %vm650 = vcmask 900096
        %v651 = vsel %vm650, %v645, %v647
        %v652 = vsel %vm650, %v647, %v649
        %v655 = vsel %vm233, %v651, 0.0
        %v656 = vsel %vm234, %v652, 0.0
        %v659 = vrot.slane %v655, 4
        %v660 = vrot.slane %v656, 4
        %663 = vst [vmem:[#allocation3 + $0x90] sm:$0xf0] %v659
        %664 = vst [vmem:[#allocation3 + $0x98] sm:$0xf0] %v660
        %v665 = vld [vmem:[#allocation2 + $0x4] sm:$0xff]
        %v666 = vld [vmem:[#allocation2 + $0xc] sm:$0xf]
        %v669 = vcombine.high %v665, %v665
        %670 = vrot.lane.b32.xlu0 %v665, 98
        %v671 = vpop.permute.xlu0 %670
        %672 = vrot.lane.b32.xlu0 %v669, 98
        %v673 = vpop.permute.xlu0 %672
        %674 = vrot.lane.b32.xlu0 %v666, 98
        %v675 = vpop.permute.xlu0 %674
        %vm676 = vcmask 801792
        %v677 = vsel %vm676, %v671, %v673
        %v678 = vsel %vm676, %v673, %v675
        %v681 = vsel %vm227, %v677, 0.0
        %v682 = vsel %vm228, %v678, 0.0
        %683 = vst [vmem:[#allocation3 + $0xa0] sm:$0xf] %v681
        %684 = vst [vmem:[#allocation3 + $0xa8] sm:$0xf] %v682
        %v685 = vld [vmem:[#allocation2 + $0x4] sm:$0xff]
        %v686 = vld [vmem:[#allocation2 + $0xc] sm:$0xf]
        %v689 = vcombine.high %v685, %v685
        %690 = vrot.lane.b32.xlu0 %v685, 97
        %v691 = vpop.permute.xlu0 %690
        %692 = vrot.lane.b32.xlu0 %v689, 97
        %v693 = vpop.permute.xlu0 %692
        %694 = vrot.lane.b32.xlu0 %v686, 97
        %v695 = vpop.permute.xlu0 %694
        %vm696 = vcmask 793600
        %v697 = vsel %vm696, %v691, %v693
        %v698 = vsel %vm696, %v693, %v695
        %v701 = vsel %vm229, %v697, 0.0
        %v702 = vsel %vm230, %v698, 0.0
        %v705 = vrot.slane %v701, 4
        %v706 = vrot.slane %v702, 4
        %709 = vst [vmem:[#allocation3 + $0xa0] sm:$0xf0] %v705
        %710 = vst [vmem:[#allocation3 + $0xa8] sm:$0xf0] %v706
        %v711 = vld [vmem:[#allocation2 + $0x4] sm:$0xff]
        %v712 = vld [vmem:[#allocation2 + $0xc] sm:$0xf]
        %v715 = vcombine.high %v711, %v711
        %716 = vrot.lane.b32.xlu0 %v711, 96
        %v717 = vpop.permute.xlu0 %716
        %718 = vrot.lane.b32.xlu0 %v715, 96
        %v719 = vpop.permute.xlu0 %718
        %720 = vrot.lane.b32.xlu0 %v712, 96
        %v721 = vpop.permute.xlu0 %720
        %vm722 = vcmask 785408
        %v723 = vsel %vm722, %v717, %v719
        %v724 = vsel %vm722, %v719, %v721
        %727 = vst [vmem:[#allocation3 + $0xb0] sm:$0xf] %v723
        %728 = vst [vmem:[#allocation3 + $0xb8] sm:$0xf] %v724
        %v729 = vld [vmem:[#allocation2 + $0x4] sm:$0xff]
        %v730 = vld [vmem:[#allocation2 + $0xc] sm:$0xf]
        %v733 = vcombine.high %v729, %v729
        %734 = vrot.lane.b32.xlu0 %v729, 95
        %v735 = vpop.permute.xlu0 %734
        %736 = vrot.lane.b32.xlu0 %v733, 95
        %v737 = vpop.permute.xlu0 %736
        %738 = vrot.lane.b32.xlu0 %v730, 95
        %v739 = vpop.permute.xlu0 %738
        %vm740 = vcmask 777216
        %v741 = vsel %vm740, %v735, %v737
        %v742 = vsel %vm740, %v737, %v739
        %v745 = vsel %vm231, %v741, 0.0
        %v746 = vsel %vm232, %v742, 0.0
        %v749 = vrot.slane %v745, 4
        %v750 = vrot.slane %v746, 4
        %753 = vst [vmem:[#allocation3 + $0xb0] sm:$0xf0] %v749
        %754 = vst [vmem:[#allocation3 + $0xb8] sm:$0xf0] %v750
        %v755 = vld [vmem:[#allocation2 + $0x4] sm:$0xff]
        %v756 = vld [vmem:[#allocation2 + $0xc] sm:$0xf]
        %v759 = vcombine.high %v755, %v755
        %760 = vrot.lane.b32.xlu0 %v755, 94
        %v761 = vpop.permute.xlu0 %760
        %762 = vrot.lane.b32.xlu0 %v759, 94
        %v763 = vpop.permute.xlu0 %762
        %764 = vrot.lane.b32.xlu0 %v756, 94
        %v765 = vpop.permute.xlu0 %764
        %vm766 = vcmask 769024
        %v767 = vsel %vm766, %v761, %v763
        %v768 = vsel %vm766, %v763, %v765
        %v771 = vsel %vm233, %v767, 0.0
        %v772 = vsel %vm234, %v768, 0.0
        %773 = vst [vmem:[#allocation3 + $0xc0] sm:$0xf] %v771
        %774 = vst [vmem:[#allocation3 + $0xc8] sm:$0xf] %v772
        %v775 = vld [vmem:[%s1] sm:$0xff]
        %v776 = vld [vmem:[%s1 + $0x8] sm:$0xff]
        %v777 = vld [vmem:[%s1 + $0x10] sm:$0xff]
        %v778 = vld [vmem:[#allocation3] sm:$0xff]
        %v779 = vld [vmem:[#allocation3 + $0x8] sm:$0xff]
        %v780 = vld [vmem:[#allocation3 + $0x10] sm:$0xff]
        %v781 = vld [vmem:[#allocation3 + $0x18] sm:$0xff]
        %v782 = vld [vmem:[#allocation3 + $0x20] sm:$0xff]
        %v783 = vld [vmem:[#allocation3 + $0x28] sm:$0xff]
        %v784 = vld [vmem:[#allocation3 + $0x30] sm:$0xff]
        %v785 = vld [vmem:[#allocation3 + $0x38] sm:$0xff]
        %v786 = vld [vmem:[#allocation3 + $0x40] sm:$0xff]
        %v787 = vld [vmem:[#allocation3 + $0x48] sm:$0xff]
        %v788 = vld [vmem:[#allocation3 + $0x50] sm:$0xff]
        %v789 = vld [vmem:[#allocation3 + $0x58] sm:$0xff]
        %v790 = vld [vmem:[#allocation3 + $0x60] sm:$0xff]
        %v791 = vld [vmem:[#allocation3 + $0x68] sm:$0xff]
        %v792 = vld [vmem:[#allocation3 + $0x70] sm:$0xff]
        %v793 = vld [vmem:[#allocation3 + $0x78] sm:$0xff]
        %v794 = vld [vmem:[#allocation3 + $0x80] sm:$0xff]
        %v795 = vld [vmem:[#allocation3 + $0x88] sm:$0xff]
        %v796 = vld [vmem:[#allocation3 + $0x90] sm:$0xff]
        %v797 = vld [vmem:[#allocation3 + $0x98] sm:$0xff]
        %v798 = vld [vmem:[#allocation3 + $0xa0] sm:$0xff]
        %v799 = vld [vmem:[#allocation3 + $0xa8] sm:$0xff]
        %v800 = vld [vmem:[#allocation3 + $0xb0] sm:$0xff]
        %v801 = vld [vmem:[#allocation3 + $0xb8] sm:$0xff]
        %v802 = vld [vmem:[#allocation3 + $0xc0] sm:$0xf]
        %v803 = vld [vmem:[#allocation3 + $0xc8] sm:$0xf]
        %vm804 = vcmask 818176
        %v806 = vsel %vm804, %v775, 0
        %v809 = vsel %vm804, %v776, 0
        %v812 = vsel %vm804, %v777, 0
        %vm814 = vcmask 1043456
        %v816 = vsel %vm814, %v802, 0
        %v819 = vsel %vm814, %v803, 0
        %821 = vmatprep.subr.mxu0 %v779
        %822 = vmatpush1.msra.mxu0 %v778
        %823 = vmatprep.subr.mxu0 %v781
        %824 = vmatpush1.msra.mxu0 %v780
        %825 = vmatprep.subr.mxu0 %v783
        %826 = vmatpush1.msra.mxu0 %v782
        %827 = vmatprep.subr.mxu0 %v785
        %828 = vmatpush1.msra.mxu0 %v784
        %829 = vmatprep.subr.mxu0 %v787
        %830 = vmatpush1.msra.mxu0 %v786
        %831 = vmatprep.subr.mxu0 %v789
        %832 = vmatpush1.msra.mxu0 %v788
        %833 = vmatprep.subr.mxu0 %v791
        %834 = vmatpush1.msra.mxu0 %v790
        %835 = vmatprep.subr.mxu0 %v793
        %836 = vmatpush1.msra.mxu0 %v792
        %837 = vmatprep.subr.mxu0 %v795
        %838 = vmatpush1.msra.mxu0 %v794
        %839 = vmatprep.subr.mxu0 %v797
        %840 = vmatpush1.msra.mxu0 %v796
        %841 = vmatprep.subr.mxu0 %v799
        %842 = vmatpush1.msra.mxu0 %v798
        %843 = vmatprep.subr.mxu0 %v801
        %844 = vmatpush1.msra.mxu0 %v800
        %845 = vmatprep.subr.mxu0 %v819
        %846 = vmatpush1.msra.mxu0 %v816
        %847 = vmatprep.subr.mxu0 0.0
        %848 = vmatpush1.msra.mxu0 0.0
        %849 = vmatprep.subr.mxu0 0.0
        %850 = vmatpush1.msra.mxu0 0.0
        %851 = vmatprep.subr.mxu0 0.0
        %852 = vmatpush1.msra.mxu0 0.0
        %853 = vmatprep.subr.mxu0 0.0
        %854 = vmatpush1.msra.mxu0 0.0
        %855 = vmatprep.subr.mxu0 0.0
        %856 = vmatpush1.msra.mxu0 0.0
        %857 = vmatprep.subr.mxu0 0.0
        %858 = vmatpush1.msra.mxu0 0.0
        %859 = vmatprep.subr.mxu0 0.0
        %860 = vmatpush1.msra.mxu0 0.0
        %861 = vmatprep.subr.mxu0 0.0
        %862 = vmatpush1.msra.mxu0 0.0
        %863 = vmatprep.subr.mxu0 0.0
        %864 = vmatpush1.msra.mxu0 0.0
        %865 = vmatprep.subr.mxu0 0.0
        %866 = vmatpush1.msra.mxu0 0.0
        %867 = vmatprep.subr.mxu0 0.0
        %868 = vmatpush1.msra.mxu0 0.0
        %869 = vmatprep.subr.mxu0 0.0
        %870 = vmatpush1.msra.mxu0 0.0
        %871 = vmatprep.subr.mxu0 0.0
        %872 = vmatpush1.msra.mxu0 0.0
        %873 = vmatprep.subr.mxu0 0.0
        %874 = vmatpush1.msra.mxu0 0.0
        %875 = vmatprep.subr.mxu0 0.0
        %876 = vmatpush1.msra.mxu0 0.0
        %877 = vmatprep.subr.mxu0 0.0
        %878 = vmatpush1.msra.mxu0 0.0
        %879 = vmatprep.subr.mxu0 0.0
        %880 = vmatpush1.msra.mxu0 0.0
        %881 = vmatprep.subr.mxu0 0.0
        %882 = vmatpush1.msra.mxu0 0.0
        %883 = vmatprep.subr.mxu0 0.0
        %884 = vmatpush1.msra.mxu0 0.0
        %885 = vmatprep.mubr.f32.mxu0 0.0
        %886 = vmatmul.mubr.f32.gmra.mrb[0].mxu0 %v806
        %v887 = vpop.f32.mrb[0].mxu0
        %v888 = vadd.f32 0.0, %v887
        %v889 = vpop.f32.mrb[0].mxu0
        %v890 = vadd.f32 0.0, %v889
        %891 = vmatprep.mubr.f32.mxu0 0.0
        %892 = vmatmul.mubr.f32.gmra.mrb[0].mxu0 %v809
        %v893 = vpop.f32.mrb[0].mxu0
        %v894 = vadd.f32 0.0, %v893
        %v895 = vpop.f32.mrb[0].mxu0
        %v896 = vadd.f32 0.0, %v895
        %897 = vmatprep.mubr.f32.mxu0 0.0
        %898 = vmatmul.mubr.f32.gmra.mrb[0].mxu0 %v812
        %v899 = vpop.f32.mrb[0].mxu0
        %v900 = vadd.f32 0.0, %v899
        %v901 = vpop.f32.mrb[0].mxu0
        %v902 = vadd.f32 0.0, %v901
        %903 = vdwg.mxu0
        %v904 = vld [vmem:[%s2] sm:$0xff]
        %v905 = vld [vmem:[%s2 + $0x8] sm:$0xff]
        %v906 = vld [vmem:[%s2 + $0x10] sm:$0xff]
        %908 = vset.pattern.permute.xlu0 0
        %909 = vperm.xlu0 %908, %v904
        %v910 = vpop.permute.xlu0 %909
        %913 = vset.pattern.permute.xlu0 0
        %914 = vperm.xlu0 %913, %v905
        %v915 = vpop.permute.xlu0 %914
        %918 = vset.pattern.permute.xlu0 0
        %919 = vperm.xlu0 %918, %v906
        %v920 = vpop.permute.xlu0 %919
        %v922 = vmul.f32 %v888, %v910
        %v923 = vmul.f32 %v890, %v910
        %v924 = vmul.f32 %v894, %v915
        %v925 = vmul.f32 %v896, %v915
        %v926 = vmul.f32 %v900, %v920
        %v927 = vmul.f32 %v902, %v920
        %v928 = vld [vmem:[%s3] sm:$0xff]
        %v929 = vld [vmem:[%s3 + $0x8] sm:$0xff]
        %v930 = vld [vmem:[%s3 + $0x10] sm:$0xff]
        %932 = vset.pattern.permute.xlu0 0
        %933 = vperm.xlu0 %932, %v928
        %v934 = vpop.permute.xlu0 %933
        %937 = vset.pattern.permute.xlu0 0
        %938 = vperm.xlu0 %937, %v929
        %v939 = vpop.permute.xlu0 %938
        %942 = vset.pattern.permute.xlu0 0
        %943 = vperm.xlu0 %942, %v930
        %v944 = vpop.permute.xlu0 %943
        %v946 = vadd.f32 %v922, %v934
        %v947 = vadd.f32 %v923, %v934
        %v948 = vadd.f32 %v924, %v939
        %v949 = vadd.f32 %v925, %v939
        %v950 = vadd.f32 %v926, %v944
        %v951 = vadd.f32 %v927, %v944
        %v952 = vmax.f32 %v946, 0.0
        %v953 = vmax.f32 %v947, 0.0
        %v954 = vmax.f32 %v948, 0.0
        %v955 = vmax.f32 %v949, 0.0
        %v956 = vmax.f32 %v950, 0.0
        %v957 = vmax.f32 %v951, 0.0
        %958 = vst [vmem:[%s190] sm:$0xff] %v952
        %959 = vst [vmem:[%s190 + $0x8] sm:$0xff] %v953
        %960 = vst [vmem:[%s190 + $0x10] sm:$0xff] %v954
        %961 = vst [vmem:[%s190 + $0x18] sm:$0xff] %v955
        %962 = vst [vmem:[%s190 + $0x20] sm:$0xff] %v956
        %963 = vst [vmem:[%s190 + $0x28] sm:$0xff] %v957
        %s964 = sand.u32 %s115, 1
        %s965 = scalar_lea.sflag [#allocation5], %s964
        %s966 = sand.u32 %s115, 1
        %s967 = smul.addr %s966, 48
        %s968 = scalar_lea.vmem [#allocation4], %s967
        // Predicated region
        $region37: #{tpu_custom_call.1} parent=35 // pred_check
          %p969 = pneg %p125
        $region38: #{tpu_custom_call.1} parent=35 // pred_check_branch
          %971 = sbr.rel (%p969) target = $region40
        $region39: #{tpu_custom_call.1} parent=35 // pred_region
          %s973 = ssub.s32 768, 768
          %974 = vsyncadd %s965, %s973
          %s975 = smul.addr %s18, 6
          %s976 = smul.addr %s975, 128
          %s977 = scalar_lea.hbm %s4, %s976
          %s978 = sshll.u32 %s968, 4
          %s979 = int_to_ptr.vmem [resolvable:$true] %s978
          %984 = dma.vmem_to_hbm [thread:$0]  %s979, 768, %s977, %s965, 256, 256, 16
        $region40: #{tpu_custom_call.1} parent=35 // pred_fallthru
          _
      $region36: #{tpu_custom_call.1} parent=5 // pred_fallthru
        _
      %p985 = scmp.le.s32.totalorder 2, %s13
      // Predicated region
      $region41: #{tpu_custom_call.1} parent=5 // pred_check
        %p986 = pneg %p985
      $region42: #{tpu_custom_call.1} parent=5 // pred_check_branch
        %988 = sbr.rel (%p986) target = $region44
      $region43: #{tpu_custom_call.1} parent=5 // pred_region
        %s989 = ssub.s32 %s13, 2
        // Predicated region
        $region45: #{tpu_custom_call.1} parent=43 // pred_check
          %p990 = pneg %p131
        $region46: #{tpu_custom_call.1} parent=43 // pred_check_branch
          %992 = sbr.rel (%p990) target = $region48
        $region47: #{tpu_custom_call.1} parent=43 // pred_region
          %s993 = sand.u32 %s116, 1
          %s994 = scalar_lea.sflag [#allocation5], %s993
          %s995 = sand.u32 %s116, 1
          %s996 = smul.addr %s995, 48
          %s997 = scalar_lea.vmem [#allocation4], %s996
          %998 = dma.done %s994, 768
        $region48: #{tpu_custom_call.1} parent=43 // pred_fallthru
          _
      $region44: #{tpu_custom_call.1} parent=5 // pred_fallthru
        _
    $region6: #{tpu_custom_call.1} parent=1 // loop_footer
      %s17 = sadd.s32 1, %s13
    $region7: #{tpu_custom_call.1} parent=1 // loop_footer_branch
      %12 = sbr.rel target = $region3
    $region8: #{tpu_custom_call.1} parent=1 // loop_exit
      _
    %999 = vsyncpa [#allocation5], 1
    %s1000 = scalar_lea.sflag [#allocation5], 1
    %1001 = vsyncpa %s1000, 1

</llo_original>
